<compile_context>
chip_gen: v7x
topology: tpu7x:2x2x1
jax: 0.10.0
libtpu: 0.0.40
codegen_flags: <defaults>
</compile_context>

<pallas_src>
import jax
import jax.numpy as jnp
from jax.experimental import pallas as pl
from jax.experimental.pallas import tpu as pltpu


def _round_up(n: int, m: int) -> int:
    return ((n + m - 1) // m) * m


# ----------------------------- Pallas kernel ---------------------------------

def _rk4_kernel(h_ref, x_ref, w1_ref, b1_ref, w2_ref, b2_ref, o_ref):
    h = h_ref[0]                      # scalar step size (SMEM)
    x = x_ref[...]                    # (TB, D) f32
    w1 = w1_ref[...]                  # (D, H) bf16 (cast once outside kernel)
    w2 = w2_ref[...]                  # (H, D) bf16

    tb = x.shape[0]
    hdim = w1.shape[1]
    ddim = w2.shape[1]

    # Hoisted bias broadcasts (would otherwise be re-emitted in all 4 stages).
    b1b = jnp.broadcast_to(b1_ref[...], (tb, hdim))
    b2b = jnp.broadcast_to(b2_ref[...], (tb, ddim))

    def f(y):
        # bf16 operands, f32 accumulation on the MXU.
        z = jnp.dot(y.astype(jnp.bfloat16), w1,
                    preferred_element_type=jnp.float32) + b1b
        a = jnp.tanh(z)
        return jnp.dot(a.astype(jnp.bfloat16), w2,
                       preferred_element_type=jnp.float32) + b2b

    half_h = 0.5 * h
    k1 = f(x)
    k2 = f(x + half_h * k1)
    k3 = f(x + half_h * k2)
    k4 = f(x + h * k3)

    c = h * (1.0 / 6.0)
    o_ref[...] = x + c * (k1 + k4) + (2.0 * c) * (k2 + k3)


# ----------------------------- wrapper ----------------------------------------

def ode_block_forward(x, params, T=1.0, tile_b: int = 256):
    """Pallas implementation of ODEBlock.forward (method='rk4', adjoint=False)."""
    w1, b1, w2, b2 = params
    B, D = x.shape
    H = w1.shape[1]

    # bf16 weights once, outside the kernel (f32 accumulate inside).
    w1b = w1.astype(jnp.bfloat16)
    w2b = w2.astype(jnp.bfloat16)

    # Batch tile: multiple of 16 (bf16 sublane packing), capped by request and
    # by the (padded) batch. VMEM budget for D=H=128, TB=256:
    #   2*(in tile) + 2*(out tile) + weights + biases  ~= 0.6 MiB  << 32 MiB.
    tb = max(16, min(_round_up(tile_b, 16), _round_up(B, 16)))
    Bp = _round_up(B, tb)
    xp = x if Bp == B else jnp.pad(x, ((0, Bp - B), (0, 0)))

    h = jnp.asarray([T], dtype=jnp.float32)   # SMEM scalar -> no recompile per T

    grid = (Bp // tb,)
    out = pl.pallas_call(
        _rk4_kernel,
        out_shape=jax.ShapeDtypeStruct((Bp, D), jnp.float32),
        grid=grid,
        in_specs=[
            pl.BlockSpec(memory_space=pltpu.MemorySpace.SMEM),   # h scalar
            pl.BlockSpec((tb, D), lambda i: (i, 0)),             # x tile
            pl.BlockSpec((D, H), lambda i: (0, 0)),              # W1 (resident)
            pl.BlockSpec((1, H), lambda i: (0, 0)),              # b1 (resident)
            pl.BlockSpec((H, D), lambda i: (0, 0)),              # W2 (resident)
            pl.BlockSpec((1, D), lambda i: (0, 0)),              # b2 (resident)
        ],
        out_specs=pl.BlockSpec((tb, D), lambda i: (i, 0)),
        compiler_params=pltpu.CompilerParams(
            dimension_semantics=("parallel",),
        ),
    )(h, xp, w1b, b1, w2b, b2)
    return out[:B]


# ----------------------------- pure-JAX reference ----------------------------

def ode_block_reference(x, params, T=1.0):
    """Same math as the kernel (bf16 matmul operands, f32 accumulate)."""
    w1, b1, w2, b2 = params
    w1b = w1.astype(jnp.bfloat16)
    w2b = w2.astype(jnp.bfloat16)
    h = jnp.float32(T)

    def f(y):
        z = jnp.dot(y.astype(jnp.bfloat16), w1b,
                    preferred_element_type=jnp.float32) + b1
        a = jnp.tanh(z)
        return jnp.dot(a.astype(jnp.bfloat16), w2b,
                       preferred_element_type=jnp.float32) + b2

    k1 = f(x)
    k2 = f(x + 0.5 * h * k1)
    k3 = f(x + 0.5 * h * k2)
    k4 = f(x + h * k3)
    return x + (h / 6.0) * (k1 + 2.0 * k2 + 2.0 * k3 + k4)


# ----------------------------- driver -----------------------------------------

if __name__ == "__main__":
    # Small shapes: batch not a multiple of the tile (exercises padding),
    # state/hidden dim = 128 (one full lane width).
    B, D, H = 40, 128, 128
    T = 1.0

    key = jax.random.PRNGKey(0)
    kx, k1, k2 = jax.random.split(key, 3)

    x = jax.random.normal(kx, (B, D), dtype=jnp.float32)

    # Deterministic parameter init (synthetic; no checkpoint load).
    w1 = jax.random.normal(k1, (D, H), dtype=jnp.float32) * (1.0 / jnp.sqrt(D))
    b1 = jnp.zeros((1, H), dtype=jnp.float32)
    w2 = jax.random.normal(k2, (H, D), dtype=jnp.float32) * (1.0 / jnp.sqrt(H))
    b2 = jnp.zeros((1, D), dtype=jnp.float32)
    params = (w1, b1, w2, b2)

    out = jax.block_until_ready(ode_block_forward(x, params, T, tile_b=32))
    ref = jax.block_until_ready(ode_block_reference(x, params, T))

    assert out.shape == x.shape and out.dtype == x.dtype
    # bf16 matmul operands in both kernel and reference -> tight tolerance OK.
    assert jnp.allclose(out, ref, rtol=1e-3, atol=1e-3), "mismatch vs reference"

    print("KERNEL_OK")
</pallas_src>

<mosaic_0001>
module attributes {stable_mosaic.version = 11 : i64} {
  func.func @_rk4_kernel(%arg0: i32, %arg1: memref<1xf32, #tpu.memory_space<smem>>, %arg2: memref<32x128xf32, #tpu.memory_space<vmem>>, %arg3: memref<128x128xbf16, #tpu.memory_space<vmem>>, %arg4: memref<1x128xf32, #tpu.memory_space<vmem>>, %arg5: memref<128x128xbf16, #tpu.memory_space<vmem>>, %arg6: memref<1x128xf32, #tpu.memory_space<vmem>>, %arg7: memref<32x128xf32, #tpu.memory_space<vmem>>) attributes {dimension_semantics = [#tpu.dimension_semantics<parallel>], iteration_bounds = array<i64: 2>, scalar_prefetch = 0 : i64, scratch_operands = 0 : i64, tpu.core_type = #tpu.core_type<tc>, window_params = [{transform_indices = @transform_0, window_bounds = array<i64: 1>}, {transform_indices = @transform_1, window_bounds = array<i64: 32, 128>}, {pipeline_mode = #tpu.pipeline_mode<synchronous>, transform_indices = @transform_2, window_bounds = array<i64: 128, 128>}, {pipeline_mode = #tpu.pipeline_mode<synchronous>, transform_indices = @transform_3, window_bounds = array<i64: 1, 128>}, {pipeline_mode = #tpu.pipeline_mode<synchronous>, transform_indices = @transform_4, window_bounds = array<i64: 128, 128>}, {pipeline_mode = #tpu.pipeline_mode<synchronous>, transform_indices = @transform_5, window_bounds = array<i64: 1, 128>}, {transform_indices = @transform_6, window_bounds = array<i64: 32, 128>}]} {
    %c0 = arith.constant 0 : index
    %0 = memref.load %arg1[%c0] : memref<1xf32, #tpu.memory_space<smem>>
    %c0_0 = arith.constant 0 : index
    %c0_1 = arith.constant 0 : index
    %1 = vector.load %arg2[%c0_0, %c0_1] : memref<32x128xf32, #tpu.memory_space<vmem>>, vector<32x128xf32>
    %c0_2 = arith.constant 0 : index
    %c0_3 = arith.constant 0 : index
    %2 = vector.load %arg3[%c0_2, %c0_3] : memref<128x128xbf16, #tpu.memory_space<vmem>>, vector<128x128xbf16>
    %c0_4 = arith.constant 0 : index
    %c0_5 = arith.constant 0 : index
    %3 = vector.load %arg5[%c0_4, %c0_5] : memref<128x128xbf16, #tpu.memory_space<vmem>>, vector<128x128xbf16>
    %c0_6 = arith.constant 0 : index
    %c0_7 = arith.constant 0 : index
    %4 = vector.load %arg4[%c0_6, %c0_7] : memref<1x128xf32, #tpu.memory_space<vmem>>, vector<1x128xf32>
    %5 = vector.shape_cast %4 : vector<1x128xf32> to vector<1x128xf32>
    %6 = vector.broadcast %5 : vector<1x128xf32> to vector<32x128xf32>
    %c0_8 = arith.constant 0 : index
    %c0_9 = arith.constant 0 : index
    %7 = vector.load %arg6[%c0_8, %c0_9] : memref<1x128xf32, #tpu.memory_space<vmem>>, vector<1x128xf32>
    %8 = vector.shape_cast %7 : vector<1x128xf32> to vector<1x128xf32>
    %9 = vector.broadcast %8 : vector<1x128xf32> to vector<32x128xf32>
    %cst = arith.constant 5.000000e-01 : f32
    %10 = arith.mulf %cst, %0 : f32
    %11 = arith.truncf %1 : vector<32x128xf32> to vector<32x128xbf16>
    %cst_10 = arith.constant dense<0.000000e+00> : vector<32x128xf32>
    %12 = tpu.matmul %11, %2, %cst_10 {dimension_numbers = #tpu.dot_dimension_numbers<[1], [0], [0], [1], [0, 0, 1, 1], [], []>} : vector<32x128xbf16>, vector<128x128xbf16>, vector<32x128xf32> -> vector<32x128xf32>
    %13 = arith.addf %12, %6 : vector<32x128xf32>
    %14 = math.tanh %13 : vector<32x128xf32>
    %15 = arith.truncf %14 : vector<32x128xf32> to vector<32x128xbf16>
    %cst_11 = arith.constant dense<0.000000e+00> : vector<32x128xf32>
    %16 = tpu.matmul %15, %3, %cst_11 {dimension_numbers = #tpu.dot_dimension_numbers<[1], [0], [0], [1], [0, 0, 1, 1], [], []>} : vector<32x128xbf16>, vector<128x128xbf16>, vector<32x128xf32> -> vector<32x128xf32>
    %17 = arith.addf %16, %9 : vector<32x128xf32>
    %18 = vector.broadcast %10 : f32 to vector<32x128xf32>
    %19 = arith.mulf %18, %17 : vector<32x128xf32>
    %20 = arith.addf %1, %19 : vector<32x128xf32>
    %21 = arith.truncf %20 : vector<32x128xf32> to vector<32x128xbf16>
    %cst_12 = arith.constant dense<0.000000e+00> : vector<32x128xf32>
    %22 = tpu.matmul %21, %2, %cst_12 {dimension_numbers = #tpu.dot_dimension_numbers<[1], [0], [0], [1], [0, 0, 1, 1], [], []>} : vector<32x128xbf16>, vector<128x128xbf16>, vector<32x128xf32> -> vector<32x128xf32>
    %23 = arith.addf %22, %6 : vector<32x128xf32>
    %24 = math.tanh %23 : vector<32x128xf32>
    %25 = arith.truncf %24 : vector<32x128xf32> to vector<32x128xbf16>
    %cst_13 = arith.constant dense<0.000000e+00> : vector<32x128xf32>
    %26 = tpu.matmul %25, %3, %cst_13 {dimension_numbers = #tpu.dot_dimension_numbers<[1], [0], [0], [1], [0, 0, 1, 1], [], []>} : vector<32x128xbf16>, vector<128x128xbf16>, vector<32x128xf32> -> vector<32x128xf32>
    %27 = arith.addf %26, %9 : vector<32x128xf32>
    %28 = vector.broadcast %10 : f32 to vector<32x128xf32>
    %29 = arith.mulf %28, %27 : vector<32x128xf32>
    %30 = arith.addf %1, %29 : vector<32x128xf32>
    %31 = arith.truncf %30 : vector<32x128xf32> to vector<32x128xbf16>
    %cst_14 = arith.constant dense<0.000000e+00> : vector<32x128xf32>
    %32 = tpu.matmul %31, %2, %cst_14 {dimension_numbers = #tpu.dot_dimension_numbers<[1], [0], [0], [1], [0, 0, 1, 1], [], []>} : vector<32x128xbf16>, vector<128x128xbf16>, vector<32x128xf32> -> vector<32x128xf32>
    %33 = arith.addf %32, %6 : vector<32x128xf32>
    %34 = math.tanh %33 : vector<32x128xf32>
    %35 = arith.truncf %34 : vector<32x128xf32> to vector<32x128xbf16>
    %cst_15 = arith.constant dense<0.000000e+00> : vector<32x128xf32>
    %36 = tpu.matmul %35, %3, %cst_15 {dimension_numbers = #tpu.dot_dimension_numbers<[1], [0], [0], [1], [0, 0, 1, 1], [], []>} : vector<32x128xbf16>, vector<128x128xbf16>, vector<32x128xf32> -> vector<32x128xf32>
    %37 = arith.addf %36, %9 : vector<32x128xf32>
    %38 = vector.broadcast %0 : f32 to vector<32x128xf32>
    %39 = arith.mulf %38, %37 : vector<32x128xf32>
    %40 = arith.addf %1, %39 : vector<32x128xf32>
    %41 = arith.truncf %40 : vector<32x128xf32> to vector<32x128xbf16>
    %cst_16 = arith.constant dense<0.000000e+00> : vector<32x128xf32>
    %42 = tpu.matmul %41, %2, %cst_16 {dimension_numbers = #tpu.dot_dimension_numbers<[1], [0], [0], [1], [0, 0, 1, 1], [], []>} : vector<32x128xbf16>, vector<128x128xbf16>, vector<32x128xf32> -> vector<32x128xf32>
    %43 = arith.addf %42, %6 : vector<32x128xf32>
    %44 = math.tanh %43 : vector<32x128xf32>
    %45 = arith.truncf %44 : vector<32x128xf32> to vector<32x128xbf16>
    %cst_17 = arith.constant dense<0.000000e+00> : vector<32x128xf32>
    %46 = tpu.matmul %45, %3, %cst_17 {dimension_numbers = #tpu.dot_dimension_numbers<[1], [0], [0], [1], [0, 0, 1, 1], [], []>} : vector<32x128xbf16>, vector<128x128xbf16>, vector<32x128xf32> -> vector<32x128xf32>
    %47 = arith.addf %46, %9 : vector<32x128xf32>
    %cst_18 = arith.constant 0.166666672 : f32
    %48 = arith.mulf %0, %cst_18 : f32
    %49 = arith.addf %17, %47 : vector<32x128xf32>
    %50 = vector.broadcast %48 : f32 to vector<32x128xf32>
    %51 = arith.mulf %50, %49 : vector<32x128xf32>
    %52 = arith.addf %1, %51 : vector<32x128xf32>
    %cst_19 = arith.constant 2.000000e+00 : f32
    %53 = arith.mulf %cst_19, %48 : f32
    %54 = arith.addf %27, %37 : vector<32x128xf32>
    %55 = vector.broadcast %53 : f32 to vector<32x128xf32>
    %56 = arith.mulf %55, %54 : vector<32x128xf32>
    %57 = arith.addf %52, %56 : vector<32x128xf32>
    %c0_20 = arith.constant 0 : index
    %c0_21 = arith.constant 0 : index
    %58 = vector.load %arg7[%c0_20, %c0_21] : memref<32x128xf32, #tpu.memory_space<vmem>>, vector<32x128xf32>
    tpu.vector_store %arg7[%c0_20, %c0_21], %57 {strides = array<i32>} : memref<32x128xf32, #tpu.memory_space<vmem>>, vector<32x128xf32>,
    return
  }
  func.func @transform_0(%arg0: i32) -> i32 {
    %c0_i32 = arith.constant 0 : i32
    %c0_i32_0 = arith.constant 0 : i32
    return %c0_i32 : i32
  }
  func.func @transform_1(%arg0: i32) -> (i32, i32) {
    %c0_i32 = arith.constant 0 : i32
    %c0_i32_0 = arith.constant 0 : i32
    return %arg0, %c0_i32 : i32, i32
  }
  func.func @transform_2(%arg0: i32) -> (i32, i32) {
    %c0_i32 = arith.constant 0 : i32
    %c0_i32_0 = arith.constant 0 : i32
    %c0_i32_1 = arith.constant 0 : i32
    return %c0_i32, %c0_i32_0 : i32, i32
  }
  func.func @transform_3(%arg0: i32) -> (i32, i32) {
    %c0_i32 = arith.constant 0 : i32
    %c0_i32_0 = arith.constant 0 : i32
    %c0_i32_1 = arith.constant 0 : i32
    return %c0_i32, %c0_i32_0 : i32, i32
  }
  func.func @transform_4(%arg0: i32) -> (i32, i32) {
    %c0_i32 = arith.constant 0 : i32
    %c0_i32_0 = arith.constant 0 : i32
    %c0_i32_1 = arith.constant 0 : i32
    return %c0_i32, %c0_i32_0 : i32, i32
  }
  func.func @transform_5(%arg0: i32) -> (i32, i32) {
    %c0_i32 = arith.constant 0 : i32
    %c0_i32_0 = arith.constant 0 : i32
    %c0_i32_1 = arith.constant 0 : i32
    return %c0_i32, %c0_i32_0 : i32, i32
  }
  func.func @transform_6(%arg0: i32) -> (i32, i32) {
    %c0_i32 = arith.constant 0 : i32
    %c0_i32_0 = arith.constant 0 : i32
    return %arg0, %c0_i32 : i32, i32
  }
}

</mosaic_0001>

<llo_original>
// kernel: tpu_custom_call.1
$region0: #{tpu_custom_call.1}
  #allocation0 [shape = 'u32[]', space=smem, size = 0x4, offset = 0x4, fixed_abs, tag = 'smem constant byte address 0x4 - core index']
  #allocation1 [shape = 'u32[144,128]{1,0:T(1,128)}', space=vmem, size = 0x12000, scoped, tag = 'internal scratch']
  #allocation2 [shape = 'f32[1]{0:T(128)S(6)}', space=smem, size = 0x200, scoped, tag = 'scoped memory for tpu_custom_call.1']
  %s0 = inlined_call_operand.<no memory space> [shape: f32[1], index: 0, kind: input, shape index: {}]
  %s1 = inlined_call_operand.hbm [shape: f32[64,128], index: 1, kind: input, shape index: {}]
  %s2 = inlined_call_operand.hbm [shape: bf16[128,128], index: 2, kind: input, shape index: {}]
  %s3 = inlined_call_operand.vmem [shape: f32[1,128], index: 3, kind: input, shape index: {}]
  %s4 = inlined_call_operand.hbm [shape: bf16[128,128], index: 4, kind: input, shape index: {}]
  %s5 = inlined_call_operand.vmem [shape: f32[1,128], index: 5, kind: input, shape index: {}]
  %s6 = inlined_call_operand.hbm [shape: f32[64,128], index: 6, kind: output, shape index: {}]
  %s7 = sld [smem:[#allocation0]]
  $region69: #{tpu_custom_call.1} parent=0
    _
  %s9 = ssub.s32 1, %s7
  %s10 = scalar_select 0, %s9, %s7
  %11 = sst [smem:[#allocation2]] %s0
  $region1: #{tpu_custom_call.1} parent=0
    #allocation3 [shape = 'u8[32768]{0}', space=vmem, size = 0x8000, scoped, tag = 'input window, operand 1']
    #allocation4 [shape = 's32[2]{0}', space=sflag, size = 0x8, scoped, tag = 'scoped memory for tpu_custom_call.1']
    #allocation5 [shape = 's32[2]{0}', space=sflag, size = 0x8, scoped, tag = 'scoped memory for tpu_custom_call.1']
    #allocation6 [shape = 'u8[32768]{0}', space=vmem, size = 0x8000, scoped, tag = 'input window, operand 2, single buffered']
    #allocation7 [shape = 's32[1]{0}', space=sflag, size = 0x4, scoped, tag = 'scoped memory for tpu_custom_call.1']
    #allocation8 [shape = 'u8[32768]{0}', space=vmem, size = 0x8000, scoped, tag = 'input window, operand 4, single buffered']
    #allocation9 [shape = 'u8[32768]{0}', space=vmem, size = 0x8000, scoped, tag = 'output window, operand 0']
    %12 = vsyncpa [#allocation4], 0
    %s13 = scalar_lea.sflag [#allocation4], 1
    %14 = vsyncpa %s13, 0
    %15 = vsyncpa [#allocation7], 0
    %16 = vsyncpa [#allocation5], 0
    %s17 = scalar_lea.sflag [#allocation5], 1
    %18 = vsyncpa %s17, 0
    loop: start=0, step=1, limit=4
    $region2: #{tpu_custom_call.1} parent=1 // loop_pre_header
      _
    $region3: #{tpu_custom_call.1} parent=1 // loop_header
      %s20 = sphi 0, %s24
      %p21 = scmp.ge.s32.totalorder %s20, 4
      %s28 = sphi 0, %s28
      %s30 = sphi 0, %s28
      %s31 = sphi 0, %s30
      %s45 = sphi 0, %s31
      %s51 = sphi 0, %s53
      %s54 = sphi 0, %s51
      %s55 = sphi 0, %s54
      %s71 = sphi 0, %s55
      %s75 = sphi 0, %s75
      %s77 = sphi 0, %s75
      %s78 = sphi 0, %s77
      %s92 = sphi 0, %s78
      %s96 = sphi 0, %s96
      %s98 = sphi 0, %s96
      %s99 = sphi 0, %s98
      %s113 = sphi 0, %s99
      %s117 = sphi 0, %s117
      %s119 = sphi 0, %s117
      %s120 = sphi 0, %s119
      %s134 = sphi 0, %s120
      %s138 = sphi 0, %s138
      %s140 = sphi 0, %s138
      %s141 = sphi 0, %s140
      %s155 = sphi 0, %s141
      %s161 = sphi 0, %s163
      %s164 = sphi 0, %s161
      %s165 = sphi 0, %s164
      %s181 = sphi 0, %s165
    $region4: #{tpu_custom_call.1} parent=1 // loop_header_branch
      %23 = sbr.rel (%p21) target = $region8
    $region5: #{tpu_custom_call.1} parent=1 // loop_body
      %s25 = ssub.s32 %s20, 1
      %s26 = ssub.s32 %s20, 2
      %s27 = sadd.s32 %s20, 1
      %s29 = sadd.s32 %s28, 1
      %p32 = scmp.eq.s32.totalorder %s20, 1
      %p33 = scmp.ne.s32.totalorder %s28, %s30
      %p34 = scmp.eq.s32.totalorder %s20, 0
      %p35 = por %p33, %p34
      %p36 = scmp.ne.s32.totalorder %s28, %s30
      %p37 = scmp.eq.s32.totalorder %s25, 1
      %p38 = por %p36, %p37
      %p39 = scmp.ne.s32.totalorder %s30, %s31
      %p40 = scmp.eq.s32.totalorder %s25, 0
      %p41 = por %p39, %p40
      %p42 = scmp.ne.s32.totalorder %s30, %s31
      %p43 = scmp.eq.s32.totalorder %s26, 1
      %p44 = por %p42, %p43
      %p46 = scmp.ne.s32.totalorder %s31, %s45
      %p47 = scmp.eq.s32.totalorder %s26, 0
      %p48 = por %p46, %p47
      %s49 = ssub.s32 %s20, %s27
      %p50 = scmp.eq.s32.totalorder %s49, 0
      %s52 = sadd.s32 %s51, 1
      %s53 = scalar_select %p50, %s51, %s52
      %p56 = pneg %p50
      %p57 = scmp.eq.s32.totalorder %s20, 1
      %p58 = por %p56, %p57
      %p59 = scmp.ne.s32.totalorder %s51, %s54
      %p60 = scmp.eq.s32.totalorder %s20, 0
      %p61 = por %p59, %p60
      %p62 = scmp.ne.s32.totalorder %s51, %s54
      %p63 = scmp.eq.s32.totalorder %s25, 1
      %p64 = por %p62, %p63
      %p65 = scmp.ne.s32.totalorder %s54, %s55
      %p66 = scmp.eq.s32.totalorder %s25, 0
      %p67 = por %p65, %p66
      %p68 = scmp.ne.s32.totalorder %s54, %s55
      %p69 = scmp.eq.s32.totalorder %s26, 1
      %p70 = por %p68, %p69
      %p72 = scmp.ne.s32.totalorder %s55, %s71
      %p73 = scmp.eq.s32.totalorder %s26, 0
      %p74 = por %p72, %p73
      %s76 = sadd.s32 %s75, 1
      %p79 = scmp.eq.s32.totalorder %s20, 1
      %p80 = scmp.ne.s32.totalorder %s75, %s77
      %p81 = scmp.eq.s32.totalorder %s20, 0
      %p82 = por %p80, %p81
      %p83 = scmp.ne.s32.totalorder %s75, %s77
      %p84 = scmp.eq.s32.totalorder %s25, 1
      %p85 = por %p83, %p84
      %p86 = scmp.ne.s32.totalorder %s77, %s78
      %p87 = scmp.eq.s32.totalorder %s25, 0
      %p88 = por %p86, %p87
      %p89 = scmp.ne.s32.totalorder %s77, %s78
      %p90 = scmp.eq.s32.totalorder %s26, 1
      %p91 = por %p89, %p90
      %p93 = scmp.ne.s32.totalorder %s78, %s92
      %p94 = scmp.eq.s32.totalorder %s26, 0
      %p95 = por %p93, %p94
      %s97 = sadd.s32 %s96, 1
      %p100 = scmp.eq.s32.totalorder %s20, 1
      %p101 = scmp.ne.s32.totalorder %s96, %s98
      %p102 = scmp.eq.s32.totalorder %s20, 0
      %p103 = por %p101, %p102
      %p104 = scmp.ne.s32.totalorder %s96, %s98
      %p105 = scmp.eq.s32.totalorder %s25, 1
      %p106 = por %p104, %p105
      %p107 = scmp.ne.s32.totalorder %s98, %s99
      %p108 = scmp.eq.s32.totalorder %s25, 0
      %p109 = por %p107, %p108
      %p110 = scmp.ne.s32.totalorder %s98, %s99
      %p111 = scmp.eq.s32.totalorder %s26, 1
      %p112 = por %p110, %p111
      %p114 = scmp.ne.s32.totalorder %s99, %s113
      %p115 = scmp.eq.s32.totalorder %s26, 0
      %p116 = por %p114, %p115
      %s118 = sadd.s32 %s117, 1
      %p121 = scmp.eq.s32.totalorder %s20, 1
      %p122 = scmp.ne.s32.totalorder %s117, %s119
      %p123 = scmp.eq.s32.totalorder %s20, 0
      %p124 = por %p122, %p123
      %p125 = scmp.ne.s32.totalorder %s117, %s119
      %p126 = scmp.eq.s32.totalorder %s25, 1
      %p127 = por %p125, %p126
      %p128 = scmp.ne.s32.totalorder %s119, %s120
      %p129 = scmp.eq.s32.totalorder %s25, 0
      %p130 = por %p128, %p129
      %p131 = scmp.ne.s32.totalorder %s119, %s120
      %p132 = scmp.eq.s32.totalorder %s26, 1
      %p133 = por %p131, %p132
      %p135 = scmp.ne.s32.totalorder %s120, %s134
      %p136 = scmp.eq.s32.totalorder %s26, 0
      %p137 = por %p135, %p136
      %s139 = sadd.s32 %s138, 1
      %p142 = scmp.eq.s32.totalorder %s20, 1
      %p143 = scmp.ne.s32.totalorder %s138, %s140
      %p144 = scmp.eq.s32.totalorder %s20, 0
      %p145 = por %p143, %p144
      %p146 = scmp.ne.s32.totalorder %s138, %s140
      %p147 = scmp.eq.s32.totalorder %s25, 1
      %p148 = por %p146, %p147
      %p149 = scmp.ne.s32.totalorder %s140, %s141
      %p150 = scmp.eq.s32.totalorder %s25, 0
      %p151 = por %p149, %p150
      %p152 = scmp.ne.s32.totalorder %s140, %s141
      %p153 = scmp.eq.s32.totalorder %s26, 1
      %p154 = por %p152, %p153
      %p156 = scmp.ne.s32.totalorder %s141, %s155
      %p157 = scmp.eq.s32.totalorder %s26, 0
      %p158 = por %p156, %p157
      %s159 = ssub.s32 %s20, %s27
      %p160 = scmp.eq.s32.totalorder %s159, 0
      %s162 = sadd.s32 %s161, 1
      %s163 = scalar_select %p160, %s161, %s162
      %p166 = pneg %p160
      %p167 = scmp.eq.s32.totalorder %s20, 1
      %p168 = por %p166, %p167
      %p169 = scmp.ne.s32.totalorder %s161, %s164
      %p170 = scmp.eq.s32.totalorder %s20, 0
      %p171 = por %p169, %p170
      %p172 = scmp.ne.s32.totalorder %s161, %s164
      %p173 = scmp.eq.s32.totalorder %s25, 1
      %p174 = por %p172, %p173
      %p175 = scmp.ne.s32.totalorder %s164, %s165
      %p176 = scmp.eq.s32.totalorder %s25, 0
      %p177 = por %p175, %p176
      %p178 = scmp.ne.s32.totalorder %s164, %s165
      %p179 = scmp.eq.s32.totalorder %s26, 1
      %p180 = por %p178, %p179
      %p182 = scmp.ne.s32.totalorder %s165, %s181
      %p183 = scmp.eq.s32.totalorder %s26, 0
      %p184 = por %p182, %p183
      %p185 = scmp.le.s32.totalorder 1, %s20
      %p186 = scmp.lt.s32.totalorder %s20, 3
      %p187 = pnand %p185, %p186
      %p188 = pneg %p187
      // Predicated region
      $region9: #{tpu_custom_call.1} parent=5 // pred_check
        _
      $region10: #{tpu_custom_call.1} parent=5 // pred_check_branch
        %190 = sbr.rel (%p187) target = $region12
      $region11: #{tpu_custom_call.1} parent=5 // pred_region
        %s191 = ssub.s32 %s20, 1
        // Predicated region
        $region13: #{tpu_custom_call.1} parent=11 // pred_check
          %p192 = pneg %p41
        $region14: #{tpu_custom_call.1} parent=11 // pred_check_branch
          %194 = sbr.rel (%p192) target = $region16
        $region15: #{tpu_custom_call.1} parent=11 // pred_region
          _
        $region16: #{tpu_custom_call.1} parent=11 // pred_fallthru
          _
        // Predicated region
        $region17: #{tpu_custom_call.1} parent=11 // pred_check
          %p195 = pneg %p88
        $region18: #{tpu_custom_call.1} parent=11 // pred_check_branch
          %197 = sbr.rel (%p195) target = $region20
        $region19: #{tpu_custom_call.1} parent=11 // pred_region
          %s199 = ssub.s32 1024, 1024
          %200 = vsyncadd [#allocation7], %s199
          %s201 = sshll.u32 [#allocation6], 4
          %s202 = int_to_ptr.vmem [resolvable:$true] %s201
          %207 = dma.hbm_to_vmem [thread:$0]  %s2, 1024, %s202, [#allocation7], 64, 64, 4
        $region20: #{tpu_custom_call.1} parent=11 // pred_fallthru
          _
        // Predicated region
        $region21: #{tpu_custom_call.1} parent=11 // pred_check
          %p208 = pneg %p109
        $region22: #{tpu_custom_call.1} parent=11 // pred_check_branch
          %210 = sbr.rel (%p208) target = $region24
        $region23: #{tpu_custom_call.1} parent=11 // pred_region
          _
        $region24: #{tpu_custom_call.1} parent=11 // pred_fallthru
          _
        // Predicated region
        $region25: #{tpu_custom_call.1} parent=11 // pred_check
          %p211 = pneg %p130
        $region26: #{tpu_custom_call.1} parent=11 // pred_check_branch
          %213 = sbr.rel (%p211) target = $region28
        $region27: #{tpu_custom_call.1} parent=11 // pred_region
          %s215 = ssub.s32 1024, 1024
          %216 = vsyncadd [#allocation7], %s215
          %s217 = sshll.u32 [#allocation8], 4
          %s218 = int_to_ptr.vmem [resolvable:$true] %s217
          %223 = dma.hbm_to_vmem [thread:$0]  %s4, 1024, %s218, [#allocation7], 64, 64, 4
        $region28: #{tpu_custom_call.1} parent=11 // pred_fallthru
          _
        // Predicated region
        $region29: #{tpu_custom_call.1} parent=11 // pred_check
          %p224 = pneg %p151
        $region30: #{tpu_custom_call.1} parent=11 // pred_check_branch
          %226 = sbr.rel (%p224) target = $region32
        $region31: #{tpu_custom_call.1} parent=11 // pred_region
          _
        $region32: #{tpu_custom_call.1} parent=11 // pred_fallthru
          _
      $region12: #{tpu_custom_call.1} parent=5 // pred_fallthru
        _
      %p227 = scmp.lt.s32.totalorder %s20, 2
      // Predicated region
      $region33: #{tpu_custom_call.1} parent=5 // pred_check
        %p228 = pneg %p227
      $region34: #{tpu_custom_call.1} parent=5 // pred_check_branch
        %230 = sbr.rel (%p228) target = $region36
      $region35: #{tpu_custom_call.1} parent=5 // pred_region
        // Predicated region
        $region37: #{tpu_custom_call.1} parent=35 // pred_check
          %p231 = pneg %p61
        $region38: #{tpu_custom_call.1} parent=35 // pred_check_branch
          %233 = sbr.rel (%p231) target = $region40
        $region39: #{tpu_custom_call.1} parent=35 // pred_region
          %s234 = sand.u32 %s51, 1
          %s235 = scalar_lea.sflag [#allocation4], %s234
          %s236 = sand.u32 %s51, 1
          %s237 = smul.addr %s236, 32
          %s238 = scalar_lea.vmem [#allocation3], %s237
          %s239 = smul.u32 4, %s20
          %s241 = ssub.s32 512, 512
          %242 = vsyncadd %s235, %s241
          %s243 = smul.addr %s239, 128
          %s244 = scalar_lea.hbm %s1, %s243
          %s245 = sshll.u32 %s238, 4
          %s246 = int_to_ptr.vmem [resolvable:$true] %s245
          %251 = dma.hbm_to_vmem [thread:$0]  %s244, 512, %s246, %s235, 128, 128, 8
        $region40: #{tpu_custom_call.1} parent=35 // pred_fallthru
          _
      $region36: #{tpu_custom_call.1} parent=5 // pred_fallthru
        _
      %p252 = scmp.le.s32.totalorder 1, %s20
      %p253 = scmp.lt.s32.totalorder %s20, 3
      %p254 = pnand %p252, %p253
      %p255 = pneg %p254
      // Predicated region
      $region41: #{tpu_custom_call.1} parent=5 // pred_check
        _
      $region42: #{tpu_custom_call.1} parent=5 // pred_check_branch
        %257 = sbr.rel (%p254) target = $region44
      $region43: #{tpu_custom_call.1} parent=5 // pred_region
        %s258 = ssub.s32 %s20, 1
        %s259 = sand.u32 %s54, 1
        %s260 = scalar_lea.sflag [#allocation4], %s259
        %s261 = sand.u32 %s54, 1
        %s262 = smul.addr %s261, 32
        %s263 = scalar_lea.vmem [#allocation3], %s262
        // Predicated region
        $region45: #{tpu_custom_call.1} parent=43 // pred_check
          %p264 = pneg %p67
        $region46: #{tpu_custom_call.1} parent=43 // pred_check_branch
          %266 = sbr.rel (%p264) target = $region48
        $region47: #{tpu_custom_call.1} parent=43 // pred_region
          %267 = dma.done %s260, 512
        $region48: #{tpu_custom_call.1} parent=43 // pred_fallthru
          _
        // Predicated region
        $region49: #{tpu_custom_call.1} parent=43 // pred_check
          %p268 = pneg %p88
        $region50: #{tpu_custom_call.1} parent=43 // pred_check_branch
          %270 = sbr.rel (%p268) target = $region52
        $region51: #{tpu_custom_call.1} parent=43 // pred_region
          %271 = dma.done [#allocation7], 1024
        $region52: #{tpu_custom_call.1} parent=43 // pred_fallthru
          _
        // Predicated region
        $region53: #{tpu_custom_call.1} parent=43 // pred_check
          %p272 = pneg %p130
        $region54: #{tpu_custom_call.1} parent=43 // pred_check_branch
          %274 = sbr.rel (%p272) target = $region56
        $region55: #{tpu_custom_call.1} parent=43 // pred_region
          %275 = dma.done [#allocation7], 1024
        $region56: #{tpu_custom_call.1} parent=43 // pred_fallthru
          _
        %p276 = pneg %p41
        %p277 = pneg %p38
        %s278 = sand.u32 %s54, 1
        %s279 = scalar_lea.sflag [#allocation4], %s278
        %s280 = sand.u32 %s54, 1
        %s281 = smul.addr %s280, 32
        %s282 = scalar_lea.vmem [#allocation3], %s281
        %p283 = pneg %p67
        %p284 = pneg %p64
        %p285 = pneg %p88
        %p286 = pneg %p85
        %p287 = pneg %p109
        %p288 = pneg %p106
        %p289 = pneg %p130
        %p290 = pneg %p127
        %p291 = pneg %p151
        %p292 = pneg %p148
        %p293 = pneg %p177
        %p294 = pneg %p174
        %s295 = sand.u32 %s164, 1
        %s296 = scalar_lea.sflag [#allocation5], %s295
        %s297 = sand.u32 %s164, 1
        %s298 = smul.addr %s297, 32
        %s299 = scalar_lea.vmem [#allocation9], %s298
        %s300 = smul.u32 4, %s25
        %s301 = smul.u32 4, %s25
        %s303 = sld [smem:[#allocation2]]
        %v304 = vld [vmem:[%s263] sm:$0xff]
        %v305 = vld [vmem:[%s263 + $0x8] sm:$0xff]
        %v306 = vld [vmem:[%s263 + $0x10] sm:$0xff]
        %v307 = vld [vmem:[%s263 + $0x18] sm:$0xff]
        %v308 = vld [vmem:[#allocation6] sm:$0xf]
        %v309 = vld [vmem:[#allocation6 + $0x4] sm:$0xf]
        %v310 = vld [vmem:[#allocation6 + $0x8] sm:$0xf]
        %v311 = vld [vmem:[#allocation6 + $0xc] sm:$0xf]
        %v312 = vld [vmem:[#allocation6 + $0x10] sm:$0xf]
        %v313 = vld [vmem:[#allocation6 + $0x14] sm:$0xf]
        %v314 = vld [vmem:[#allocation6 + $0x18] sm:$0xf]
        %v315 = vld [vmem:[#allocation6 + $0x1c] sm:$0xf]
        %v316 = vld [vmem:[#allocation6 + $0x20] sm:$0xf]
        %v317 = vld [vmem:[#allocation6 + $0x24] sm:$0xf]
        %v318 = vld [vmem:[#allocation6 + $0x28] sm:$0xf]
        %v319 = vld [vmem:[#allocation6 + $0x2c] sm:$0xf]
        %v320 = vld [vmem:[#allocation6 + $0x30] sm:$0xf]
        %v321 = vld [vmem:[#allocation6 + $0x34] sm:$0xf]
        %v322 = vld [vmem:[#allocation6 + $0x38] sm:$0xf]
        %v323 = vld [vmem:[#allocation6 + $0x3c] sm:$0xf]
        %v324 = vld [vmem:[#allocation8] sm:$0xf]
        %v325 = vld [vmem:[#allocation8 + $0x4] sm:$0xf]
        %v326 = vld [vmem:[#allocation8 + $0x8] sm:$0xf]
        %v327 = vld [vmem:[#allocation8 + $0xc] sm:$0xf]
        %v328 = vld [vmem:[#allocation8 + $0x10] sm:$0xf]
        %v329 = vld [vmem:[#allocation8 + $0x14] sm:$0xf]
        %v330 = vld [vmem:[#allocation8 + $0x18] sm:$0xf]
        %v331 = vld [vmem:[#allocation8 + $0x1c] sm:$0xf]
        %v332 = vld [vmem:[#allocation8 + $0x20] sm:$0xf]
        %v333 = vld [vmem:[#allocation8 + $0x24] sm:$0xf]
        %v334 = vld [vmem:[#allocation8 + $0x28] sm:$0xf]
        %v335 = vld [vmem:[#allocation8 + $0x2c] sm:$0xf]
        %v336 = vld [vmem:[#allocation8 + $0x30] sm:$0xf]
        %v337 = vld [vmem:[#allocation8 + $0x34] sm:$0xf]
        %v338 = vld [vmem:[#allocation8 + $0x38] sm:$0xf]
        %v339 = vld [vmem:[#allocation8 + $0x3c] sm:$0xf]
        %v340 = vld [vmem:[%s3] sm:$0x1]
        %v342 = vlaneseq
        %v343 = vshrl.u32 %v342, 7
        %v344 = vsub.s32 0, %v343
        %v345 = vrot.slane %v340, %v344
        %v347 = vld [vmem:[%s5] sm:$0x1]
        %v349 = vlaneseq
        %v350 = vshrl.u32 %v349, 7
        %v351 = vsub.s32 0, %v350
        %v352 = vrot.slane %v347, %v351
        %s354 = smul.f32 %s303, 0.5
        %v355 = vpack.c.bf16 %v305, %v304
        %v356 = vpack.c.bf16 %v307, %v306
        %v373 = vunpack.c.l.b16 %v308
        %v374 = vunpack.c.l.b16 %v309
        %v375 = vunpack.c.l.b16 %v310
        %v376 = vunpack.c.l.b16 %v311
        %v377 = vunpack.c.l.b16 %v312
        %v378 = vunpack.c.l.b16 %v313
        %v379 = vunpack.c.l.b16 %v314
        %v380 = vunpack.c.l.b16 %v315
        %v381 = vunpack.c.l.b16 %v316
        %v382 = vunpack.c.l.b16 %v317
        %v383 = vunpack.c.l.b16 %v318
        %v384 = vunpack.c.l.b16 %v319
        %v385 = vunpack.c.l.b16 %v320
        %v386 = vunpack.c.l.b16 %v321
        %v387 = vunpack.c.l.b16 %v322
        %v388 = vunpack.c.l.b16 %v323
        %v389 = vpack.c.b16 %v374, %v373
        %v390 = vpack.c.b16 %v376, %v375
        %v391 = vpack.c.b16 %v378, %v377
        %v392 = vpack.c.b16 %v380, %v379
        %v393 = vpack.c.b16 %v382, %v381
        %v394 = vpack.c.b16 %v384, %v383
        %v395 = vpack.c.b16 %v386, %v385
        %v396 = vpack.c.b16 %v388, %v387
        %405 = vmatprep.subr.bf16.mxu0 0
        %406 = vmatpush1.bf16.msra.mxu0 %v389
        %407 = vmatprep.subr.bf16.mxu0 0
        %408 = vmatpush1.bf16.msra.mxu0 %v390
        %409 = vmatprep.subr.bf16.mxu0 0
        %410 = vmatpush1.bf16.msra.mxu0 %v391
        %411 = vmatprep.subr.bf16.mxu0 0
        %412 = vmatpush1.bf16.msra.mxu0 %v392
        %413 = vmatprep.subr.bf16.mxu0 0
        %414 = vmatpush1.bf16.msra.mxu0 %v393
        %415 = vmatprep.subr.bf16.mxu0 0
        %416 = vmatpush1.bf16.msra.mxu0 %v394
        %417 = vmatprep.subr.bf16.mxu0 0
        %418 = vmatpush1.bf16.msra.mxu0 %v395
        %419 = vmatprep.subr.bf16.mxu0 0
        %420 = vmatpush1.bf16.msra.mxu0 %v396
        %421 = vmatprep.subr.bf16.mxu0 0
        %422 = vmatpush1.bf16.msra.mxu0 0
        %423 = vmatprep.subr.bf16.mxu0 0
        %424 = vmatpush1.bf16.msra.mxu0 0
        %425 = vmatprep.subr.bf16.mxu0 0
        %426 = vmatpush1.bf16.msra.mxu0 0
        %427 = vmatprep.subr.bf16.mxu0 0
        %428 = vmatpush1.bf16.msra.mxu0 0
        %429 = vmatprep.subr.bf16.mxu0 0
        %430 = vmatpush1.bf16.msra.mxu0 0
        %431 = vmatprep.subr.bf16.mxu0 0
        %432 = vmatpush1.bf16.msra.mxu0 0
        %433 = vmatprep.subr.bf16.mxu0 0
        %434 = vmatpush1.bf16.msra.mxu0 0
        %435 = vmatprep.subr.bf16.mxu0 0
        %436 = vmatpush1.bf16.msra.mxu0 0
        %437 = vmatprep.mubr.bf16.mxu0 0
        %438 = vmatmul.mubr.bf16.gmra.mrb[0].mxu0 %v355
        %v439 = vpop.f32.mrb[0].mxu0
        %v440 = vadd.f32 %v345, %v439
        %v441 = vpop.f32.mrb[0].mxu0
        %v442 = vpop.f32.mrb[0].mxu0
        %v443 = vadd.f32 %v345, %v442
        %v444 = vpop.f32.mrb[0].mxu0
        %445 = vmatprep.mubr.bf16.mxu0 0
        %446 = vmatmul.mubr.bf16.gmra.mrb[0].mxu0 %v356
        %v447 = vpop.f32.mrb[0].mxu0
        %v448 = vadd.f32 %v345, %v447
        %v449 = vpop.f32.mrb[0].mxu0
        %v450 = vpop.f32.mrb[0].mxu0
        %v451 = vadd.f32 %v345, %v450
        %v452 = vpop.f32.mrb[0].mxu0
        %453 = vdwg.mxu0
        %v454 = vtanh.pop %v440
        %v455 = vtanh.pop %v443
        %v456 = vtanh.pop %v448
        %v457 = vtanh.pop %v451
        %v458 = vpack.c.bf16 %v455, %v454
        %v459 = vpack.c.bf16 %v457, %v456
        %v476 = vunpack.c.l.b16 %v324
        %v477 = vunpack.c.l.b16 %v325
        %v478 = vunpack.c.l.b16 %v326
        %v479 = vunpack.c.l.b16 %v327
        %v480 = vunpack.c.l.b16 %v328
        %v481 = vunpack.c.l.b16 %v329
        %v482 = vunpack.c.l.b16 %v330
        %v483 = vunpack.c.l.b16 %v331
        %v484 = vunpack.c.l.b16 %v332
        %v485 = vunpack.c.l.b16 %v333
        %v486 = vunpack.c.l.b16 %v334
        %v487 = vunpack.c.l.b16 %v335
        %v488 = vunpack.c.l.b16 %v336
        %v489 = vunpack.c.l.b16 %v337
        %v490 = vunpack.c.l.b16 %v338
        %v491 = vunpack.c.l.b16 %v339
        %v492 = vpack.c.b16 %v477, %v476
        %v493 = vpack.c.b16 %v479, %v478
        %v494 = vpack.c.b16 %v481, %v480
        %v495 = vpack.c.b16 %v483, %v482
        %v496 = vpack.c.b16 %v485, %v484
        %v497 = vpack.c.b16 %v487, %v486
        %v498 = vpack.c.b16 %v489, %v488
        %v499 = vpack.c.b16 %v491, %v490
        %508 = vmatprep.subr.bf16.mxu0 0
        %509 = vmatpush1.bf16.msra.mxu0 %v492
        %510 = vmatprep.subr.bf16.mxu0 0
        %511 = vmatpush1.bf16.msra.mxu0 %v493
        %512 = vmatprep.subr.bf16.mxu0 0
        %513 = vmatpush1.bf16.msra.mxu0 %v494
        %514 = vmatprep.subr.bf16.mxu0 0
        %515 = vmatpush1.bf16.msra.mxu0 %v495
        %516 = vmatprep.subr.bf16.mxu0 0
        %517 = vmatpush1.bf16.msra.mxu0 %v496
        %518 = vmatprep.subr.bf16.mxu0 0
        %519 = vmatpush1.bf16.msra.mxu0 %v497
        %520 = vmatprep.subr.bf16.mxu0 0
        %521 = vmatpush1.bf16.msra.mxu0 %v498
        %522 = vmatprep.subr.bf16.mxu0 0
        %523 = vmatpush1.bf16.msra.mxu0 %v499
        %524 = vmatprep.subr.bf16.mxu0 0
        %525 = vmatpush1.bf16.msra.mxu0 0
        %526 = vmatprep.subr.bf16.mxu0 0
        %527 = vmatpush1.bf16.msra.mxu0 0
        %528 = vmatprep.subr.bf16.mxu0 0
        %529 = vmatpush1.bf16.msra.mxu0 0
        %530 = vmatprep.subr.bf16.mxu0 0
        %531 = vmatpush1.bf16.msra.mxu0 0
        %532 = vmatprep.subr.bf16.mxu0 0
        %533 = vmatpush1.bf16.msra.mxu0 0
        %534 = vmatprep.subr.bf16.mxu0 0
        %535 = vmatpush1.bf16.msra.mxu0 0
        %536 = vmatprep.subr.bf16.mxu0 0
        %537 = vmatpush1.bf16.msra.mxu0 0
        %538 = vmatprep.subr.bf16.mxu0 0
        %539 = vmatpush1.bf16.msra.mxu0 0
        %540 = vmatprep.mubr.bf16.mxu0 0
        %541 = vmatmul.mubr.bf16.gmra.mrb[0].mxu0 %v458
        %v542 = vpop.f32.mrb[0].mxu0
        %v543 = vadd.f32 %v352, %v542
        %v544 = vpop.f32.mrb[0].mxu0
        %v545 = vpop.f32.mrb[0].mxu0
        %v546 = vadd.f32 %v352, %v545
        %v547 = vpop.f32.mrb[0].mxu0
        %548 = vmatprep.mubr.bf16.mxu0 0
        %549 = vmatmul.mubr.bf16.gmra.mrb[0].mxu0 %v459
        %v550 = vpop.f32.mrb[0].mxu0
        %v551 = vadd.f32 %v352, %v550
        %v552 = vpop.f32.mrb[0].mxu0
        %v553 = vpop.f32.mrb[0].mxu0
        %v554 = vadd.f32 %v352, %v553
        %v555 = vpop.f32.mrb[0].mxu0
        %556 = vdwg.mxu0
        %v557 = vstv %s354
        %v558 = vmul.f32 %v557, %v543
        %v559 = vmul.f32 %v557, %v546
        %v560 = vmul.f32 %v557, %v551
        %v561 = vmul.f32 %v557, %v554
        %v562 = vadd.f32 %v304, %v558
        %v563 = vadd.f32 %v305, %v559
        %v564 = vadd.f32 %v306, %v560
        %v565 = vadd.f32 %v307, %v561
        %v566 = vpack.c.bf16 %v563, %v562
        %v567 = vpack.c.bf16 %v565, %v564
        %568 = vmatprep.subr.bf16.mxu0 0
        %569 = vmatpush1.bf16.msra.mxu0 %v389
        %570 = vmatprep.subr.bf16.mxu0 0
        %571 = vmatpush1.bf16.msra.mxu0 %v390
        %572 = vmatprep.subr.bf16.mxu0 0
        %573 = vmatpush1.bf16.msra.mxu0 %v391
        %574 = vmatprep.subr.bf16.mxu0 0
        %575 = vmatpush1.bf16.msra.mxu0 %v392
        %576 = vmatprep.subr.bf16.mxu0 0
        %577 = vmatpush1.bf16.msra.mxu0 %v393
        %578 = vmatprep.subr.bf16.mxu0 0
        %579 = vmatpush1.bf16.msra.mxu0 %v394
        %580 = vmatprep.subr.bf16.mxu0 0
        %581 = vmatpush1.bf16.msra.mxu0 %v395
        %582 = vmatprep.subr.bf16.mxu0 0
        %583 = vmatpush1.bf16.msra.mxu0 %v396
        %584 = vmatprep.subr.bf16.mxu0 0
        %585 = vmatpush1.bf16.msra.mxu0 0
        %586 = vmatprep.subr.bf16.mxu0 0
        %587 = vmatpush1.bf16.msra.mxu0 0
        %588 = vmatprep.subr.bf16.mxu0 0
        %589 = vmatpush1.bf16.msra.mxu0 0
        %590 = vmatprep.subr.bf16.mxu0 0
        %591 = vmatpush1.bf16.msra.mxu0 0
        %592 = vmatprep.subr.bf16.mxu0 0
        %593 = vmatpush1.bf16.msra.mxu0 0
        %594 = vmatprep.subr.bf16.mxu0 0
        %595 = vmatpush1.bf16.msra.mxu0 0
        %596 = vmatprep.subr.bf16.mxu0 0
        %597 = vmatpush1.bf16.msra.mxu0 0
        %598 = vmatprep.subr.bf16.mxu0 0
        %599 = vmatpush1.bf16.msra.mxu0 0
        %600 = vmatprep.mubr.bf16.mxu0 0
        %601 = vmatmul.mubr.bf16.gmra.mrb[0].mxu0 %v566
        %v602 = vpop.f32.mrb[0].mxu0
        %v603 = vadd.f32 %v345, %v602
        %v604 = vpop.f32.mrb[0].mxu0
        %v605 = vpop.f32.mrb[0].mxu0
        %v606 = vadd.f32 %v345, %v605
        %v607 = vpop.f32.mrb[0].mxu0
        %608 = vmatprep.mubr.bf16.mxu0 0
        %609 = vmatmul.mubr.bf16.gmra.mrb[0].mxu0 %v567
        %v610 = vpop.f32.mrb[0].mxu0
        %v611 = vadd.f32 %v345, %v610
        %v612 = vpop.f32.mrb[0].mxu0
        %v613 = vpop.f32.mrb[0].mxu0
        %v614 = vadd.f32 %v345, %v613
        %v615 = vpop.f32.mrb[0].mxu0
        %616 = vdwg.mxu0
        %v617 = vtanh.pop %v603
        %v618 = vtanh.pop %v606
        %v619 = vtanh.pop %v611
        %v620 = vtanh.pop %v614
        %v621 = vpack.c.bf16 %v618, %v617
        %v622 = vpack.c.bf16 %v620, %v619
        %623 = vmatprep.subr.bf16.mxu0 0
        %624 = vmatpush1.bf16.msra.mxu0 %v492
        %625 = vmatprep.subr.bf16.mxu0 0
        %626 = vmatpush1.bf16.msra.mxu0 %v493
        %627 = vmatprep.subr.bf16.mxu0 0
        %628 = vmatpush1.bf16.msra.mxu0 %v494
        %629 = vmatprep.subr.bf16.mxu0 0
        %630 = vmatpush1.bf16.msra.mxu0 %v495
        %631 = vmatprep.subr.bf16.mxu0 0
        %632 = vmatpush1.bf16.msra.mxu0 %v496
        %633 = vmatprep.subr.bf16.mxu0 0
        %634 = vmatpush1.bf16.msra.mxu0 %v497
        %635 = vmatprep.subr.bf16.mxu0 0
        %636 = vmatpush1.bf16.msra.mxu0 %v498
        %637 = vmatprep.subr.bf16.mxu0 0
        %638 = vmatpush1.bf16.msra.mxu0 %v499
        %639 = vmatprep.subr.bf16.mxu0 0
        %640 = vmatpush1.bf16.msra.mxu0 0
        %641 = vmatprep.subr.bf16.mxu0 0
        %642 = vmatpush1.bf16.msra.mxu0 0
        %643 = vmatprep.subr.bf16.mxu0 0
        %644 = vmatpush1.bf16.msra.mxu0 0
        %645 = vmatprep.subr.bf16.mxu0 0
        %646 = vmatpush1.bf16.msra.mxu0 0
        %647 = vmatprep.subr.bf16.mxu0 0
        %648 = vmatpush1.bf16.msra.mxu0 0
        %649 = vmatprep.subr.bf16.mxu0 0
        %650 = vmatpush1.bf16.msra.mxu0 0
        %651 = vmatprep.subr.bf16.mxu0 0
        %652 = vmatpush1.bf16.msra.mxu0 0
        %653 = vmatprep.subr.bf16.mxu0 0
        %654 = vmatpush1.bf16.msra.mxu0 0
        %655 = vmatprep.mubr.bf16.mxu0 0
        %656 = vmatmul.mubr.bf16.gmra.mrb[0].mxu0 %v621
        %v657 = vpop.f32.mrb[0].mxu0
        %v658 = vadd.f32 %v352, %v657
        %v659 = vpop.f32.mrb[0].mxu0
        %v660 = vpop.f32.mrb[0].mxu0
        %v661 = vadd.f32 %v352, %v660
        %v662 = vpop.f32.mrb[0].mxu0
        %663 = vmatprep.mubr.bf16.mxu0 0
        %664 = vmatmul.mubr.bf16.gmra.mrb[0].mxu0 %v622
        %v665 = vpop.f32.mrb[0].mxu0
        %v666 = vadd.f32 %v352, %v665
        %v667 = vpop.f32.mrb[0].mxu0
        %v668 = vpop.f32.mrb[0].mxu0
        %v669 = vadd.f32 %v352, %v668
        %v670 = vpop.f32.mrb[0].mxu0
        %671 = vdwg.mxu0
        %v672 = vmul.f32 %v557, %v658
        %v673 = vmul.f32 %v557, %v661
        %v674 = vmul.f32 %v557, %v666
        %v675 = vmul.f32 %v557, %v669
        %v676 = vadd.f32 %v304, %v672
        %v677 = vadd.f32 %v305, %v673
        %v678 = vadd.f32 %v306, %v674
        %v679 = vadd.f32 %v307, %v675
        %v680 = vpack.c.bf16 %v677, %v676
        %v681 = vpack.c.bf16 %v679, %v678
        %682 = vmatprep.subr.bf16.mxu0 0
        %683 = vmatpush1.bf16.msra.mxu0 %v389
        %684 = vmatprep.subr.bf16.mxu0 0
        %685 = vmatpush1.bf16.msra.mxu0 %v390
        %686 = vmatprep.subr.bf16.mxu0 0
        %687 = vmatpush1.bf16.msra.mxu0 %v391
        %688 = vmatprep.subr.bf16.mxu0 0
        %689 = vmatpush1.bf16.msra.mxu0 %v392
        %690 = vmatprep.subr.bf16.mxu0 0
        %691 = vmatpush1.bf16.msra.mxu0 %v393
        %692 = vmatprep.subr.bf16.mxu0 0
        %693 = vmatpush1.bf16.msra.mxu0 %v394
        %694 = vmatprep.subr.bf16.mxu0 0
        %695 = vmatpush1.bf16.msra.mxu0 %v395
        %696 = vmatprep.subr.bf16.mxu0 0
        %697 = vmatpush1.bf16.msra.mxu0 %v396
        %698 = vmatprep.subr.bf16.mxu0 0
        %699 = vmatpush1.bf16.msra.mxu0 0
        %700 = vmatprep.subr.bf16.mxu0 0
        %701 = vmatpush1.bf16.msra.mxu0 0
        %702 = vmatprep.subr.bf16.mxu0 0
        %703 = vmatpush1.bf16.msra.mxu0 0
        %704 = vmatprep.subr.bf16.mxu0 0
        %705 = vmatpush1.bf16.msra.mxu0 0
        %706 = vmatprep.subr.bf16.mxu0 0
        %707 = vmatpush1.bf16.msra.mxu0 0
        %708 = vmatprep.subr.bf16.mxu0 0
        %709 = vmatpush1.bf16.msra.mxu0 0
        %710 = vmatprep.subr.bf16.mxu0 0
        %711 = vmatpush1.bf16.msra.mxu0 0
        %712 = vmatprep.subr.bf16.mxu0 0
        %713 = vmatpush1.bf16.msra.mxu0 0
        %714 = vmatprep.mubr.bf16.mxu0 0
        %715 = vmatmul.mubr.bf16.gmra.mrb[0].mxu0 %v680
        %v716 = vpop.f32.mrb[0].mxu0
        %v717 = vadd.f32 %v345, %v716
        %v718 = vpop.f32.mrb[0].mxu0
        %v719 = vpop.f32.mrb[0].mxu0
        %v720 = vadd.f32 %v345, %v719
        %v721 = vpop.f32.mrb[0].mxu0
        %722 = vmatprep.mubr.bf16.mxu0 0
        %723 = vmatmul.mubr.bf16.gmra.mrb[0].mxu0 %v681
        %v724 = vpop.f32.mrb[0].mxu0
        %v725 = vadd.f32 %v345, %v724
        %v726 = vpop.f32.mrb[0].mxu0
        %v727 = vpop.f32.mrb[0].mxu0
        %v728 = vadd.f32 %v345, %v727
        %v729 = vpop.f32.mrb[0].mxu0
        %730 = vdwg.mxu0
        %v731 = vtanh.pop %v717
        %v732 = vtanh.pop %v720
        %v733 = vtanh.pop %v725
        %v734 = vtanh.pop %v728
        %v735 = vpack.c.bf16 %v732, %v731
        %v736 = vpack.c.bf16 %v734, %v733
        %737 = vmatprep.subr.bf16.mxu0 0
        %738 = vmatpush1.bf16.msra.mxu0 %v492
        %739 = vmatprep.subr.bf16.mxu0 0
        %740 = vmatpush1.bf16.msra.mxu0 %v493
        %741 = vmatprep.subr.bf16.mxu0 0
        %742 = vmatpush1.bf16.msra.mxu0 %v494
        %743 = vmatprep.subr.bf16.mxu0 0
        %744 = vmatpush1.bf16.msra.mxu0 %v495
        %745 = vmatprep.subr.bf16.mxu0 0
        %746 = vmatpush1.bf16.msra.mxu0 %v496
        %747 = vmatprep.subr.bf16.mxu0 0
        %748 = vmatpush1.bf16.msra.mxu0 %v497
        %749 = vmatprep.subr.bf16.mxu0 0
        %750 = vmatpush1.bf16.msra.mxu0 %v498
        %751 = vmatprep.subr.bf16.mxu0 0
        %752 = vmatpush1.bf16.msra.mxu0 %v499
        %753 = vmatprep.subr.bf16.mxu0 0
        %754 = vmatpush1.bf16.msra.mxu0 0
        %755 = vmatprep.subr.bf16.mxu0 0
        %756 = vmatpush1.bf16.msra.mxu0 0
        %757 = vmatprep.subr.bf16.mxu0 0
        %758 = vmatpush1.bf16.msra.mxu0 0
        %759 = vmatprep.subr.bf16.mxu0 0
        %760 = vmatpush1.bf16.msra.mxu0 0
        %761 = vmatprep.subr.bf16.mxu0 0
        %762 = vmatpush1.bf16.msra.mxu0 0
        %763 = vmatprep.subr.bf16.mxu0 0
        %764 = vmatpush1.bf16.msra.mxu0 0
        %765 = vmatprep.subr.bf16.mxu0 0
        %766 = vmatpush1.bf16.msra.mxu0 0
        %767 = vmatprep.subr.bf16.mxu0 0
        %768 = vmatpush1.bf16.msra.mxu0 0
        %769 = vmatprep.mubr.bf16.mxu0 0
        %770 = vmatmul.mubr.bf16.gmra.mrb[0].mxu0 %v735
        %v771 = vpop.f32.mrb[0].mxu0
        %v772 = vadd.f32 %v352, %v771
        %v773 = vpop.f32.mrb[0].mxu0
        %v774 = vpop.f32.mrb[0].mxu0
        %v775 = vadd.f32 %v352, %v774
        %v776 = vpop.f32.mrb[0].mxu0
        %777 = vmatprep.mubr.bf16.mxu0 0
        %778 = vmatmul.mubr.bf16.gmra.mrb[0].mxu0 %v736
        %v779 = vpop.f32.mrb[0].mxu0
        %v780 = vadd.f32 %v352, %v779
        %v781 = vpop.f32.mrb[0].mxu0
        %v782 = vpop.f32.mrb[0].mxu0
        %v783 = vadd.f32 %v352, %v782
        %v784 = vpop.f32.mrb[0].mxu0
        %785 = vdwg.mxu0
        %v786 = vstv %s303
        %v787 = vmul.f32 %v786, %v772
        %v788 = vmul.f32 %v786, %v775
        %v789 = vmul.f32 %v786, %v780
        %v790 = vmul.f32 %v786, %v783
        %v791 = vadd.f32 %v304, %v787
        %v792 = vadd.f32 %v305, %v788
        %v793 = vadd.f32 %v306, %v789
        %v794 = vadd.f32 %v307, %v790
        %v795 = vpack.c.bf16 %v792, %v791
        %v796 = vpack.c.bf16 %v794, %v793
        %797 = vmatprep.subr.bf16.mxu0 0
        %798 = vmatpush1.bf16.msra.mxu0 %v389
        %799 = vmatprep.subr.bf16.mxu0 0
        %800 = vmatpush1.bf16.msra.mxu0 %v390
        %801 = vmatprep.subr.bf16.mxu0 0
        %802 = vmatpush1.bf16.msra.mxu0 %v391
        %803 = vmatprep.subr.bf16.mxu0 0
        %804 = vmatpush1.bf16.msra.mxu0 %v392
        %805 = vmatprep.subr.bf16.mxu0 0
        %806 = vmatpush1.bf16.msra.mxu0 %v393
        %807 = vmatprep.subr.bf16.mxu0 0
        %808 = vmatpush1.bf16.msra.mxu0 %v394
        %809 = vmatprep.subr.bf16.mxu0 0
        %810 = vmatpush1.bf16.msra.mxu0 %v395
        %811 = vmatprep.subr.bf16.mxu0 0
        %812 = vmatpush1.bf16.msra.mxu0 %v396
        %813 = vmatprep.subr.bf16.mxu0 0
        %814 = vmatpush1.bf16.msra.mxu0 0
        %815 = vmatprep.subr.bf16.mxu0 0
        %816 = vmatpush1.bf16.msra.mxu0 0
        %817 = vmatprep.subr.bf16.mxu0 0
        %818 = vmatpush1.bf16.msra.mxu0 0
        %819 = vmatprep.subr.bf16.mxu0 0
        %820 = vmatpush1.bf16.msra.mxu0 0
        %821 = vmatprep.subr.bf16.mxu0 0
        %822 = vmatpush1.bf16.msra.mxu0 0
        %823 = vmatprep.subr.bf16.mxu0 0
        %824 = vmatpush1.bf16.msra.mxu0 0
        %825 = vmatprep.subr.bf16.mxu0 0
        %826 = vmatpush1.bf16.msra.mxu0 0
        %827 = vmatprep.subr.bf16.mxu0 0
        %828 = vmatpush1.bf16.msra.mxu0 0
        %829 = vmatprep.mubr.bf16.mxu0 0
        %830 = vmatmul.mubr.bf16.gmra.mrb[0].mxu0 %v795
        %v831 = vpop.f32.mrb[0].mxu0
        %v832 = vadd.f32 %v345, %v831
        %v833 = vpop.f32.mrb[0].mxu0
        %v834 = vpop.f32.mrb[0].mxu0
        %v835 = vadd.f32 %v345, %v834
        %v836 = vpop.f32.mrb[0].mxu0
        %837 = vmatprep.mubr.bf16.mxu0 0
        %838 = vmatmul.mubr.bf16.gmra.mrb[0].mxu0 %v796
        %v839 = vpop.f32.mrb[0].mxu0
        %v840 = vadd.f32 %v345, %v839
        %v841 = vpop.f32.mrb[0].mxu0
        %v842 = vpop.f32.mrb[0].mxu0
        %v843 = vadd.f32 %v345, %v842
        %v844 = vpop.f32.mrb[0].mxu0
        %845 = vdwg.mxu0
        %v846 = vtanh.pop %v832
        %v847 = vtanh.pop %v835
        %v848 = vtanh.pop %v840
        %v849 = vtanh.pop %v843
        %v850 = vpack.c.bf16 %v847, %v846
        %v851 = vpack.c.bf16 %v849, %v848
        %852 = vmatprep.subr.bf16.mxu0 0
        %853 = vmatpush1.bf16.msra.mxu0 %v492
        %854 = vmatprep.subr.bf16.mxu0 0
        %855 = vmatpush1.bf16.msra.mxu0 %v493
        %856 = vmatprep.subr.bf16.mxu0 0
        %857 = vmatpush1.bf16.msra.mxu0 %v494
        %858 = vmatprep.subr.bf16.mxu0 0
        %859 = vmatpush1.bf16.msra.mxu0 %v495
        %860 = vmatprep.subr.bf16.mxu0 0
        %861 = vmatpush1.bf16.msra.mxu0 %v496
        %862 = vmatprep.subr.bf16.mxu0 0
        %863 = vmatpush1.bf16.msra.mxu0 %v497
        %864 = vmatprep.subr.bf16.mxu0 0
        %865 = vmatpush1.bf16.msra.mxu0 %v498
        %866 = vmatprep.subr.bf16.mxu0 0
        %867 = vmatpush1.bf16.msra.mxu0 %v499
        %868 = vmatprep.subr.bf16.mxu0 0
        %869 = vmatpush1.bf16.msra.mxu0 0
        %870 = vmatprep.subr.bf16.mxu0 0
        %871 = vmatpush1.bf16.msra.mxu0 0
        %872 = vmatprep.subr.bf16.mxu0 0
        %873 = vmatpush1.bf16.msra.mxu0 0
        %874 = vmatprep.subr.bf16.mxu0 0
        %875 = vmatpush1.bf16.msra.mxu0 0
        %876 = vmatprep.subr.bf16.mxu0 0
        %877 = vmatpush1.bf16.msra.mxu0 0
        %878 = vmatprep.subr.bf16.mxu0 0
        %879 = vmatpush1.bf16.msra.mxu0 0
        %880 = vmatprep.subr.bf16.mxu0 0
        %881 = vmatpush1.bf16.msra.mxu0 0
        %882 = vmatprep.subr.bf16.mxu0 0
        %883 = vmatpush1.bf16.msra.mxu0 0
        %884 = vmatprep.mubr.bf16.mxu0 0
        %885 = vmatmul.mubr.bf16.gmra.mrb[0].mxu0 %v850
        %v886 = vpop.f32.mrb[0].mxu0
        %v887 = vadd.f32 %v352, %v886
        %v888 = vpop.f32.mrb[0].mxu0
        %v889 = vpop.f32.mrb[0].mxu0
        %v890 = vadd.f32 %v352, %v889
        %v891 = vpop.f32.mrb[0].mxu0
        %892 = vmatprep.mubr.bf16.mxu0 0
        %893 = vmatmul.mubr.bf16.gmra.mrb[0].mxu0 %v851
        %v894 = vpop.f32.mrb[0].mxu0
        %v895 = vadd.f32 %v352, %v894
        %v896 = vpop.f32.mrb[0].mxu0
        %v897 = vpop.f32.mrb[0].mxu0
        %v898 = vadd.f32 %v352, %v897
        %v899 = vpop.f32.mrb[0].mxu0
        %900 = vdwg.mxu0
        %s901 = smul.f32 %s303, 0.16666667
        %v902 = vadd.f32 %v543, %v887
        %v903 = vadd.f32 %v546, %v890
        %v904 = vadd.f32 %v551, %v895
        %v905 = vadd.f32 %v554, %v898
        %v906 = vstv %s901
        %v907 = vmul.f32 %v906, %v902
        %v908 = vmul.f32 %v906, %v903
        %v909 = vmul.f32 %v906, %v904
        %v910 = vmul.f32 %v906, %v905
        %v911 = vadd.f32 %v304, %v907
        %v912 = vadd.f32 %v305, %v908
        %v913 = vadd.f32 %v306, %v909
        %v914 = vadd.f32 %v307, %v910
        %s915 = smul.f32 %s901, 2.0
        %v916 = vadd.f32 %v658, %v772
        %v917 = vadd.f32 %v661, %v775
        %v918 = vadd.f32 %v666, %v780
        %v919 = vadd.f32 %v669, %v783
        %v920 = vstv %s915
        %v921 = vmul.f32 %v920, %v916
        %v922 = vmul.f32 %v920, %v917
        %v923 = vmul.f32 %v920, %v918
        %v924 = vmul.f32 %v920, %v919
        %v925 = vadd.f32 %v911, %v921
        %v926 = vadd.f32 %v912, %v922
        %v927 = vadd.f32 %v913, %v923
        %v928 = vadd.f32 %v914, %v924
        %929 = vst [vmem:[%s299] sm:$0xff] %v925
        %930 = vst [vmem:[%s299 + $0x8] sm:$0xff] %v926
        %931 = vst [vmem:[%s299 + $0x10] sm:$0xff] %v927
        %932 = vst [vmem:[%s299 + $0x18] sm:$0xff] %v928
        %s933 = sand.u32 %s164, 1
        %s934 = scalar_lea.sflag [#allocation5], %s933
        %s935 = sand.u32 %s164, 1
        %s936 = smul.addr %s935, 32
        %s937 = scalar_lea.vmem [#allocation9], %s936
        // Predicated region
        $region57: #{tpu_custom_call.1} parent=43 // pred_check
          %p938 = pneg %p174
        $region58: #{tpu_custom_call.1} parent=43 // pred_check_branch
          %940 = sbr.rel (%p938) target = $region60
        $region59: #{tpu_custom_call.1} parent=43 // pred_region
          %s941 = smul.u32 4, %s25
          %s943 = ssub.s32 512, 512
          %944 = vsyncadd %s934, %s943
          %s945 = smul.addr %s941, 128
          %s946 = scalar_lea.hbm %s6, %s945
          %s947 = sshll.u32 %s937, 4
          %s948 = int_to_ptr.vmem [resolvable:$true] %s947
          %953 = dma.vmem_to_hbm [thread:$0]  %s948, 512, %s946, %s934, 128, 128, 8
        $region60: #{tpu_custom_call.1} parent=43 // pred_fallthru
          _
      $region44: #{tpu_custom_call.1} parent=5 // pred_fallthru
        _
      %p954 = scmp.le.s32.totalorder 2, %s20
      // Predicated region
      $region61: #{tpu_custom_call.1} parent=5 // pred_check
        %p955 = pneg %p954
      $region62: #{tpu_custom_call.1} parent=5 // pred_check_branch
        %957 = sbr.rel (%p955) target = $region64
      $region63: #{tpu_custom_call.1} parent=5 // pred_region
        %s958 = ssub.s32 %s20, 2
        // Predicated region
        $region65: #{tpu_custom_call.1} parent=63 // pred_check
          %p959 = pneg %p180
        $region66: #{tpu_custom_call.1} parent=63 // pred_check_branch
          %961 = sbr.rel (%p959) target = $region68
        $region67: #{tpu_custom_call.1} parent=63 // pred_region
          %s962 = sand.u32 %s165, 1
          %s963 = scalar_lea.sflag [#allocation5], %s962
          %s964 = sand.u32 %s165, 1
          %s965 = smul.addr %s964, 32
          %s966 = scalar_lea.vmem [#allocation9], %s965
          %967 = dma.done %s963, 512
        $region68: #{tpu_custom_call.1} parent=63 // pred_fallthru
          _
      $region64: #{tpu_custom_call.1} parent=5 // pred_fallthru
        _
    $region6: #{tpu_custom_call.1} parent=1 // loop_footer
      %s24 = sadd.s32 1, %s20
    $region7: #{tpu_custom_call.1} parent=1 // loop_footer_branch
      %19 = sbr.rel target = $region3
    $region8: #{tpu_custom_call.1} parent=1 // loop_exit
      _
    %968 = vsyncpa [#allocation4], 1
    %s969 = scalar_lea.sflag [#allocation4], 1
    %970 = vsyncpa %s969, 1
    %971 = vsyncpa [#allocation7], 1
    %972 = vsyncpa [#allocation5], 1
    %s973 = scalar_lea.sflag [#allocation5], 1
    %974 = vsyncpa %s973, 1

</llo_original>
